<compile_context>
chip_gen: v6e
topology: v6e:2x2x1
jax: 0.10.0
libtpu: 0.0.40
codegen_flags: <defaults>
</compile_context>

<pallas_src>
import jax
import jax.numpy as jnp
from jax.experimental import pallas as pl
from jax.experimental.pallas import tpu as pltpu


def _linear_calib_kernel(alpha_ref, beta_ref, x_ref, o_ref):
    # Elementwise hot path (VPU): out = alpha * x + beta.
    # Compute in f32 (scalar promotes), cast on the store for non-f32 inputs.
    alpha = alpha_ref[0]
    beta = beta_ref[0]
    o_ref[...] = (alpha * x_ref[...] + beta).astype(o_ref.dtype)


def _choose_tile(M, N, itemsize, target_bytes=4 << 20):
    """Pick a lane-dense tile with ~target_bytes working set.

    Double-buffered input + output => ~4 * target_bytes resident VMEM (~16 MiB),
    which fits under the raised scoped-VMEM limit (32 MiB) on every generation
    while being large enough to sit near the HBM roofline.
    """
    if N <= 4096:
        tile_cols = N                 # full width: always a legal block dim
    else:
        tile_cols = 2048              # large multiple of 128 -> unmasked stores
    rows = (target_bytes // max(1, tile_cols * itemsize)) // 8 * 8
    rows = max(8, min(rows, 4096))
    tile_rows = M if rows >= M else rows
    return tile_rows, tile_cols


def linear_model(x, alpha, beta, *, min_pallas_elems=1024):
    """Pallas implementation of LinearModel.forward: alpha * x + beta."""
    orig_shape = x.shape
    orig_dtype = x.dtype

    # Tiny inputs: a single-tile pallas_call is pure launch/pipeline overhead;
    # XLA fuses the two elementwise ops for free.
    if x.size < min_pallas_elems:
        return jnp.asarray(alpha, orig_dtype) * x + jnp.asarray(beta, orig_dtype)

    # Flatten to 2-D with the innermost dim on the lane axis.
    if x.ndim == 1:
        x2 = x.reshape(1, x.shape[0])
    elif x.ndim == 2:
        x2 = x
    else:
        x2 = x.reshape(-1, x.shape[-1])
    M, N = x2.shape

    # Narrow lane dim: fold rows into the lane axis (free reshape on a contiguous
    # array, pure layout change for an elementwise op) so stores stay wide /
    # unmasked and DMAs are larger.
    if N < 512:
        k = 1
        while M % (k * 2) == 0 and (k * 2) * N <= 4096:
            k *= 2
        if k > 1:
            M, N = M // k, k * N

    # Wide-and-short arrays (e.g. flattened 1-D inputs, M == 1): fold lanes back
    # into rows so tiles are (rows x ~2-4K lanes) rather than (few x huge), which
    # keeps per-tile DMAs large and the pipeline deep.
    while N > 4096 and N % 2 == 0 and M < 512:
        M, N = M * 2, N // 2

    if (M, N) != x2.shape:
        x2 = x2.reshape(M, N)

    tile_rows, tile_cols = _choose_tile(M, N, x2.dtype.itemsize)
    grid = (pl.cdiv(M, tile_rows), pl.cdiv(N, tile_cols))

    alpha_arr = jnp.asarray(alpha, jnp.float32).reshape((1,))
    beta_arr = jnp.asarray(beta, jnp.float32).reshape((1,))

    out2 = pl.pallas_call(
        _linear_calib_kernel,
        out_shape=jax.ShapeDtypeStruct((M, N), orig_dtype),
        grid_spec=pltpu.PrefetchScalarGridSpec(
            num_scalar_prefetch=0,
            grid=grid,
            in_specs=[
                pl.BlockSpec(memory_space=pltpu.SMEM),                      # alpha (1,)
                pl.BlockSpec(memory_space=pltpu.SMEM),                      # beta  (1,)
                pl.BlockSpec((tile_rows, tile_cols), lambda i, j: (i, j)),  # x tile
            ],
            out_specs=pl.BlockSpec((tile_rows, tile_cols), lambda i, j: (i, j)),
        ),
        compiler_params=pltpu.CompilerParams(
            dimension_semantics=("parallel", "parallel"),
            vmem_limit_bytes=32 << 20,
        ),
    )(alpha_arr, beta_arr, x2)

    return out2.reshape(orig_shape)


if __name__ == "__main__":
    # Parameters (nn.Parameter(torch.tensor(alpha/beta))); non-identity values
    # so both the scale and the shift are actually exercised.
    alpha = jnp.float32(1.25)
    beta = jnp.float32(-0.5)

    key = jax.random.PRNGKey(0)

    # Calibration-style input: (batch, n_classes) logits. Big enough to take the
    # Pallas path (and exercise the narrow-lane folding), still small.
    x = jax.random.normal(key, (256, 384), dtype=jnp.float32)
    out = jax.block_until_ready(linear_model(x, alpha, beta))
    ref = alpha * x + beta
    assert out.shape == x.shape and out.dtype == x.dtype
    assert jnp.allclose(out, ref, atol=1e-6, rtol=1e-6), "mismatch vs reference (2-D)"

    # Tiny input: exercises the XLA-fusion fallback path.
    x_small = jax.random.normal(jax.random.PRNGKey(1), (2, 10), dtype=jnp.float32)
    out_small = jax.block_until_ready(linear_model(x_small, alpha, beta))
    assert jnp.allclose(out_small, alpha * x_small + beta, atol=1e-6, rtol=1e-6)

    # bf16 input: exercises the f32-compute + cast-on-store path.
    x_bf16 = jax.random.normal(jax.random.PRNGKey(2), (128, 256), dtype=jnp.bfloat16)
    out_bf16 = jax.block_until_ready(linear_model(x_bf16, alpha, beta))
    ref_bf16 = (alpha * x_bf16.astype(jnp.float32) + beta).astype(jnp.bfloat16)
    assert out_bf16.dtype == jnp.bfloat16
    assert jnp.allclose(out_bf16.astype(jnp.float32), ref_bf16.astype(jnp.float32),
                        atol=1e-2, rtol=1e-2), "mismatch vs reference (bf16)"

    print("KERNEL_OK")
</pallas_src>

<mosaic_0001>
module attributes {stable_mosaic.version = 11 : i64} {
  func.func @_linear_calib_kernel(%arg0: i32, %arg1: i32, %arg2: memref<1xf32, #tpu.memory_space<smem>>, %arg3: memref<1xf32, #tpu.memory_space<smem>>, %arg4: memref<32x3072xf32, #tpu.memory_space<vmem>>, %arg5: memref<32x3072xf32, #tpu.memory_space<vmem>>) attributes {dimension_semantics = [#tpu.dimension_semantics<parallel>, #tpu.dimension_semantics<parallel>], iteration_bounds = array<i64: 1, 1>, scalar_prefetch = 0 : i64, scratch_operands = 0 : i64, tpu.core_type = #tpu.core_type<tc>, window_params = [{transform_indices = @transform_0, window_bounds = array<i64: 1>}, {transform_indices = @transform_1, window_bounds = array<i64: 1>}, {transform_indices = @transform_2, window_bounds = array<i64: 32, 3072>}, {transform_indices = @transform_3, window_bounds = array<i64: 32, 3072>}]} {
    %c0 = arith.constant 0 : index
    %0 = memref.load %arg2[%c0] : memref<1xf32, #tpu.memory_space<smem>>
    %c0_0 = arith.constant 0 : index
    %1 = memref.load %arg3[%c0_0] : memref<1xf32, #tpu.memory_space<smem>>
    %c0_1 = arith.constant 0 : index
    %c0_2 = arith.constant 0 : index
    %2 = vector.load %arg4[%c0_1, %c0_2] : memref<32x3072xf32, #tpu.memory_space<vmem>>, vector<32x3072xf32>
    %3 = vector.broadcast %0 : f32 to vector<32x3072xf32>
    %4 = arith.mulf %3, %2 : vector<32x3072xf32>
    %5 = vector.broadcast %1 : f32 to vector<32x3072xf32>
    %6 = arith.addf %4, %5 : vector<32x3072xf32>
    %c0_3 = arith.constant 0 : index
    %c0_4 = arith.constant 0 : index
    %7 = vector.load %arg5[%c0_3, %c0_4] : memref<32x3072xf32, #tpu.memory_space<vmem>>, vector<32x3072xf32>
    tpu.vector_store %arg5[%c0_3, %c0_4], %6 {strides = array<i32>} : memref<32x3072xf32, #tpu.memory_space<vmem>>, vector<32x3072xf32>,
    return
  }
  func.func @transform_0(%arg0: i32, %arg1: i32) -> i32 {
    %c0_i32 = arith.constant 0 : i32
    %c0_i32_0 = arith.constant 0 : i32
    return %c0_i32 : i32
  }
  func.func @transform_1(%arg0: i32, %arg1: i32) -> i32 {
    %c0_i32 = arith.constant 0 : i32
    %c0_i32_0 = arith.constant 0 : i32
    return %c0_i32 : i32
  }
  func.func @transform_2(%arg0: i32, %arg1: i32) -> (i32, i32) {
    %c0_i32 = arith.constant 0 : i32
    return %arg0, %arg1 : i32, i32
  }
  func.func @transform_3(%arg0: i32, %arg1: i32) -> (i32, i32) {
    %c0_i32 = arith.constant 0 : i32
    return %arg0, %arg1 : i32, i32
  }
}

</mosaic_0001>

<llo_original>
// kernel: tpu_custom_call.1
$region0: #{tpu_custom_call.1}
  #allocation0 [shape = 'u32[]', space=smem, size = 0x4, offset = 0x4, fixed_abs, tag = 'smem constant byte address 0x4 - core index']
  #allocation1 [shape = 'u32[144,128]{1,0:T(1,128)}', space=vmem, size = 0x12000, scoped, tag = 'internal scratch']
  #allocation2 [shape = 'f32[1]{0:T(128)S(6)}', space=smem, size = 0x200, scoped, tag = 'scoped memory for tpu_custom_call.1']
  #allocation3 [shape = 'f32[1]{0:T(128)S(6)}', space=smem, size = 0x200, scoped, tag = 'scoped memory for tpu_custom_call.1']
  %s0 = inlined_call_operand.<no memory space> [shape: f32[1], index: 0, kind: input, shape index: {}]
  %s1 = inlined_call_operand.<no memory space> [shape: f32[1], index: 1, kind: input, shape index: {}]
  %s2 = inlined_call_operand.hbm [shape: f32[32,3072], index: 2, kind: input, shape index: {}]
  %s3 = inlined_call_operand.hbm [shape: f32[32,3072], index: 3, kind: output, shape index: {}]
  %s4 = sld [smem:[#allocation0]]
  $region26: #{tpu_custom_call.1} parent=0
    _
  %s6 = ssub.s32 1, %s4
  %s7 = scalar_select 0, %s6, %s4
  %8 = sst [smem:[#allocation2]] %s0
  %9 = sst [smem:[#allocation3]] %s1
  $region1: #{tpu_custom_call.1} parent=0
    #allocation4 [shape = 'u8[393216]{0}', space=vmem, size = 0x60000, scoped, tag = 'input window, operand 2, single buffered']
    #allocation5 [shape = 's32[1]{0}', space=sflag, size = 0x4, scoped, tag = 'scoped memory for tpu_custom_call.1']
    #allocation6 [shape = 's32[1]{0}', space=sflag, size = 0x4, scoped, tag = 'scoped memory for tpu_custom_call.1']
    #allocation7 [shape = 'u8[393216]{0}', space=vmem, size = 0x60000, scoped, tag = 'output window, operand 0, single buffered']
    %10 = vsyncpa [#allocation5], 0
    %11 = vsyncpa [#allocation6], 0
    // Predicated region
    $region2: #{tpu_custom_call.1} parent=1 // pred_check
      _
    $region3: #{tpu_custom_call.1} parent=1 // pred_check_branch
      %13 = sbr.rel (0) target = $region5
    $region4: #{tpu_custom_call.1} parent=1 // pred_region
      _
    $region5: #{tpu_custom_call.1} parent=1 // pred_fallthru
      _
    // Predicated region
    $region6: #{tpu_custom_call.1} parent=1 // pred_check
      _
    $region7: #{tpu_custom_call.1} parent=1 // pred_check_branch
      %15 = sbr.rel (0) target = $region9
    $region8: #{tpu_custom_call.1} parent=1 // pred_region
      _
    $region9: #{tpu_custom_call.1} parent=1 // pred_fallthru
      _
    // Predicated region
    $region10: #{tpu_custom_call.1} parent=1 // pred_check
      _
    $region11: #{tpu_custom_call.1} parent=1 // pred_check_branch
      %17 = sbr.rel (0) target = $region13
    $region12: #{tpu_custom_call.1} parent=1 // pred_region
      %s19 = ssub.s32 12288, 12288
      %20 = vsyncadd [#allocation5], %s19
      %s21 = sshll.u32 [#allocation4], 4
      %s22 = int_to_ptr.vmem [resolvable:$true] %s21
      %27 = dma.hbm_to_vmem [thread:$0]  %s2, 12288, %s22, [#allocation5], 3072, 3072, 192
    $region13: #{tpu_custom_call.1} parent=1 // pred_fallthru
      _
    // Predicated region
    $region14: #{tpu_custom_call.1} parent=1 // pred_check
      _
    $region15: #{tpu_custom_call.1} parent=1 // pred_check_branch
      %29 = sbr.rel (0) target = $region17
    $region16: #{tpu_custom_call.1} parent=1 // pred_region
      %30 = dma.done [#allocation5], 12288
    $region17: #{tpu_custom_call.1} parent=1 // pred_fallthru
      _
    %s31 = sld [smem:[#allocation2]]
    %s32 = sld [smem:[#allocation3]]
    %v33 = vld [vmem:[#allocation4] sm:$0xff]
    %v34 = vld [vmem:[#allocation4 + $0x8] sm:$0xff]
    %v35 = vld [vmem:[#allocation4 + $0x10] sm:$0xff]
    %v36 = vld [vmem:[#allocation4 + $0x18] sm:$0xff]
    %v37 = vld [vmem:[#allocation4 + $0x20] sm:$0xff]
    %v38 = vld [vmem:[#allocation4 + $0x28] sm:$0xff]
    %v39 = vld [vmem:[#allocation4 + $0x30] sm:$0xff]
    %v40 = vld [vmem:[#allocation4 + $0x38] sm:$0xff]
    %v41 = vld [vmem:[#allocation4 + $0x40] sm:$0xff]
    %v42 = vld [vmem:[#allocation4 + $0x48] sm:$0xff]
    %v43 = vld [vmem:[#allocation4 + $0x50] sm:$0xff]
    %v44 = vld [vmem:[#allocation4 + $0x58] sm:$0xff]
    %v45 = vld [vmem:[#allocation4 + $0x60] sm:$0xff]
    %v46 = vld [vmem:[#allocation4 + $0x68] sm:$0xff]
    %v47 = vld [vmem:[#allocation4 + $0x70] sm:$0xff]
    %v48 = vld [vmem:[#allocation4 + $0x78] sm:$0xff]
    %v49 = vld [vmem:[#allocation4 + $0x80] sm:$0xff]
    %v50 = vld [vmem:[#allocation4 + $0x88] sm:$0xff]
    %v51 = vld [vmem:[#allocation4 + $0x90] sm:$0xff]
    %v52 = vld [vmem:[#allocation4 + $0x98] sm:$0xff]
    %v53 = vld [vmem:[#allocation4 + $0xa0] sm:$0xff]
    %v54 = vld [vmem:[#allocation4 + $0xa8] sm:$0xff]
    %v55 = vld [vmem:[#allocation4 + $0xb0] sm:$0xff]
    %v56 = vld [vmem:[#allocation4 + $0xb8] sm:$0xff]
    %v57 = vld [vmem:[#allocation4 + $0xc0] sm:$0xff]
    %v58 = vld [vmem:[#allocation4 + $0xc8] sm:$0xff]
    %v59 = vld [vmem:[#allocation4 + $0xd0] sm:$0xff]
    %v60 = vld [vmem:[#allocation4 + $0xd8] sm:$0xff]
    %v61 = vld [vmem:[#allocation4 + $0xe0] sm:$0xff]
    %v62 = vld [vmem:[#allocation4 + $0xe8] sm:$0xff]
    %v63 = vld [vmem:[#allocation4 + $0xf0] sm:$0xff]
    %v64 = vld [vmem:[#allocation4 + $0xf8] sm:$0xff]
    %v65 = vld [vmem:[#allocation4 + $0x100] sm:$0xff]
    %v66 = vld [vmem:[#allocation4 + $0x108] sm:$0xff]
    %v67 = vld [vmem:[#allocation4 + $0x110] sm:$0xff]
    %v68 = vld [vmem:[#allocation4 + $0x118] sm:$0xff]
    %v69 = vld [vmem:[#allocation4 + $0x120] sm:$0xff]
    %v70 = vld [vmem:[#allocation4 + $0x128] sm:$0xff]
    %v71 = vld [vmem:[#allocation4 + $0x130] sm:$0xff]
    %v72 = vld [vmem:[#allocation4 + $0x138] sm:$0xff]
    %v73 = vld [vmem:[#allocation4 + $0x140] sm:$0xff]
    %v74 = vld [vmem:[#allocation4 + $0x148] sm:$0xff]
    %v75 = vld [vmem:[#allocation4 + $0x150] sm:$0xff]
    %v76 = vld [vmem:[#allocation4 + $0x158] sm:$0xff]
    %v77 = vld [vmem:[#allocation4 + $0x160] sm:$0xff]
    %v78 = vld [vmem:[#allocation4 + $0x168] sm:$0xff]
    %v79 = vld [vmem:[#allocation4 + $0x170] sm:$0xff]
    %v80 = vld [vmem:[#allocation4 + $0x178] sm:$0xff]
    %v81 = vld [vmem:[#allocation4 + $0x180] sm:$0xff]
    %v82 = vld [vmem:[#allocation4 + $0x188] sm:$0xff]
    %v83 = vld [vmem:[#allocation4 + $0x190] sm:$0xff]
    %v84 = vld [vmem:[#allocation4 + $0x198] sm:$0xff]
    %v85 = vld [vmem:[#allocation4 + $0x1a0] sm:$0xff]
    %v86 = vld [vmem:[#allocation4 + $0x1a8] sm:$0xff]
    %v87 = vld [vmem:[#allocation4 + $0x1b0] sm:$0xff]
    %v88 = vld [vmem:[#allocation4 + $0x1b8] sm:$0xff]
    %v89 = vld [vmem:[#allocation4 + $0x1c0] sm:$0xff]
    %v90 = vld [vmem:[#allocation4 + $0x1c8] sm:$0xff]
    %v91 = vld [vmem:[#allocation4 + $0x1d0] sm:$0xff]
    %v92 = vld [vmem:[#allocation4 + $0x1d8] sm:$0xff]
    %v93 = vld [vmem:[#allocation4 + $0x1e0] sm:$0xff]
    %v94 = vld [vmem:[#allocation4 + $0x1e8] sm:$0xff]
    %v95 = vld [vmem:[#allocation4 + $0x1f0] sm:$0xff]
    %v96 = vld [vmem:[#allocation4 + $0x1f8] sm:$0xff]
    %v97 = vld [vmem:[#allocation4 + $0x200] sm:$0xff]
    %v98 = vld [vmem:[#allocation4 + $0x208] sm:$0xff]
    %v99 = vld [vmem:[#allocation4 + $0x210] sm:$0xff]
    %v100 = vld [vmem:[#allocation4 + $0x218] sm:$0xff]
    %v101 = vld [vmem:[#allocation4 + $0x220] sm:$0xff]
    %v102 = vld [vmem:[#allocation4 + $0x228] sm:$0xff]
    %v103 = vld [vmem:[#allocation4 + $0x230] sm:$0xff]
    %v104 = vld [vmem:[#allocation4 + $0x238] sm:$0xff]
    %v105 = vld [vmem:[#allocation4 + $0x240] sm:$0xff]
    %v106 = vld [vmem:[#allocation4 + $0x248] sm:$0xff]
    %v107 = vld [vmem:[#allocation4 + $0x250] sm:$0xff]
    %v108 = vld [vmem:[#allocation4 + $0x258] sm:$0xff]
    %v109 = vld [vmem:[#allocation4 + $0x260] sm:$0xff]
    %v110 = vld [vmem:[#allocation4 + $0x268] sm:$0xff]
    %v111 = vld [vmem:[#allocation4 + $0x270] sm:$0xff]
    %v112 = vld [vmem:[#allocation4 + $0x278] sm:$0xff]
    %v113 = vld [vmem:[#allocation4 + $0x280] sm:$0xff]
    %v114 = vld [vmem:[#allocation4 + $0x288] sm:$0xff]
    %v115 = vld [vmem:[#allocation4 + $0x290] sm:$0xff]
    %v116 = vld [vmem:[#allocation4 + $0x298] sm:$0xff]
    %v117 = vld [vmem:[#allocation4 + $0x2a0] sm:$0xff]
    %v118 = vld [vmem:[#allocation4 + $0x2a8] sm:$0xff]
    %v119 = vld [vmem:[#allocation4 + $0x2b0] sm:$0xff]
    %v120 = vld [vmem:[#allocation4 + $0x2b8] sm:$0xff]
    %v121 = vld [vmem:[#allocation4 + $0x2c0] sm:$0xff]
    %v122 = vld [vmem:[#allocation4 + $0x2c8] sm:$0xff]
    %v123 = vld [vmem:[#allocation4 + $0x2d0] sm:$0xff]
    %v124 = vld [vmem:[#allocation4 + $0x2d8] sm:$0xff]
    %v125 = vld [vmem:[#allocation4 + $0x2e0] sm:$0xff]
    %v126 = vld [vmem:[#allocation4 + $0x2e8] sm:$0xff]
    %v127 = vld [vmem:[#allocation4 + $0x2f0] sm:$0xff]
    %v128 = vld [vmem:[#allocation4 + $0x2f8] sm:$0xff]
    %v129 = vstv %s31
    %v130 = vmul.f32 %v129, %v33
    %v131 = vmul.f32 %v129, %v34
    %v132 = vmul.f32 %v129, %v35
    %v133 = vmul.f32 %v129, %v36
    %v134 = vmul.f32 %v129, %v37
    %v135 = vmul.f32 %v129, %v38
    %v136 = vmul.f32 %v129, %v39
    %v137 = vmul.f32 %v129, %v40
    %v138 = vmul.f32 %v129, %v41
    %v139 = vmul.f32 %v129, %v42
    %v140 = vmul.f32 %v129, %v43
    %v141 = vmul.f32 %v129, %v44
    %v142 = vmul.f32 %v129, %v45
    %v143 = vmul.f32 %v129, %v46
    %v144 = vmul.f32 %v129, %v47
    %v145 = vmul.f32 %v129, %v48
    %v146 = vmul.f32 %v129, %v49
    %v147 = vmul.f32 %v129, %v50
    %v148 = vmul.f32 %v129, %v51
    %v149 = vmul.f32 %v129, %v52
    %v150 = vmul.f32 %v129, %v53
    %v151 = vmul.f32 %v129, %v54
    %v152 = vmul.f32 %v129, %v55
    %v153 = vmul.f32 %v129, %v56
    %v154 = vmul.f32 %v129, %v57
    %v155 = vmul.f32 %v129, %v58
    %v156 = vmul.f32 %v129, %v59
    %v157 = vmul.f32 %v129, %v60
    %v158 = vmul.f32 %v129, %v61
    %v159 = vmul.f32 %v129, %v62
    %v160 = vmul.f32 %v129, %v63
    %v161 = vmul.f32 %v129, %v64
    %v162 = vmul.f32 %v129, %v65
    %v163 = vmul.f32 %v129, %v66
    %v164 = vmul.f32 %v129, %v67
    %v165 = vmul.f32 %v129, %v68
    %v166 = vmul.f32 %v129, %v69
    %v167 = vmul.f32 %v129, %v70
    %v168 = vmul.f32 %v129, %v71
    %v169 = vmul.f32 %v129, %v72
    %v170 = vmul.f32 %v129, %v73
    %v171 = vmul.f32 %v129, %v74
    %v172 = vmul.f32 %v129, %v75
    %v173 = vmul.f32 %v129, %v76
    %v174 = vmul.f32 %v129, %v77
    %v175 = vmul.f32 %v129, %v78
    %v176 = vmul.f32 %v129, %v79
    %v177 = vmul.f32 %v129, %v80
    %v178 = vmul.f32 %v129, %v81
    %v179 = vmul.f32 %v129, %v82
    %v180 = vmul.f32 %v129, %v83
    %v181 = vmul.f32 %v129, %v84
    %v182 = vmul.f32 %v129, %v85
    %v183 = vmul.f32 %v129, %v86
    %v184 = vmul.f32 %v129, %v87
    %v185 = vmul.f32 %v129, %v88
    %v186 = vmul.f32 %v129, %v89
    %v187 = vmul.f32 %v129, %v90
    %v188 = vmul.f32 %v129, %v91
    %v189 = vmul.f32 %v129, %v92
    %v190 = vmul.f32 %v129, %v93
    %v191 = vmul.f32 %v129, %v94
    %v192 = vmul.f32 %v129, %v95
    %v193 = vmul.f32 %v129, %v96
    %v194 = vmul.f32 %v129, %v97
    %v195 = vmul.f32 %v129, %v98
    %v196 = vmul.f32 %v129, %v99
    %v197 = vmul.f32 %v129, %v100
    %v198 = vmul.f32 %v129, %v101
    %v199 = vmul.f32 %v129, %v102
    %v200 = vmul.f32 %v129, %v103
    %v201 = vmul.f32 %v129, %v104
    %v202 = vmul.f32 %v129, %v105
    %v203 = vmul.f32 %v129, %v106
    %v204 = vmul.f32 %v129, %v107
    %v205 = vmul.f32 %v129, %v108
    %v206 = vmul.f32 %v129, %v109
    %v207 = vmul.f32 %v129, %v110
    %v208 = vmul.f32 %v129, %v111
    %v209 = vmul.f32 %v129, %v112
    %v210 = vmul.f32 %v129, %v113
    %v211 = vmul.f32 %v129, %v114
    %v212 = vmul.f32 %v129, %v115
    %v213 = vmul.f32 %v129, %v116
    %v214 = vmul.f32 %v129, %v117
    %v215 = vmul.f32 %v129, %v118
    %v216 = vmul.f32 %v129, %v119
    %v217 = vmul.f32 %v129, %v120
    %v218 = vmul.f32 %v129, %v121
    %v219 = vmul.f32 %v129, %v122
    %v220 = vmul.f32 %v129, %v123
    %v221 = vmul.f32 %v129, %v124
    %v222 = vmul.f32 %v129, %v125
    %v223 = vmul.f32 %v129, %v126
    %v224 = vmul.f32 %v129, %v127
    %v225 = vmul.f32 %v129, %v128
    %v226 = vstv %s32
    %v227 = vadd.f32 %v130, %v226
    %v228 = vadd.f32 %v131, %v226
    %v229 = vadd.f32 %v132, %v226
    %v230 = vadd.f32 %v133, %v226
    %v231 = vadd.f32 %v134, %v226
    %v232 = vadd.f32 %v135, %v226
    %v233 = vadd.f32 %v136, %v226
    %v234 = vadd.f32 %v137, %v226
    %v235 = vadd.f32 %v138, %v226
    %v236 = vadd.f32 %v139, %v226
    %v237 = vadd.f32 %v140, %v226
    %v238 = vadd.f32 %v141, %v226
    %v239 = vadd.f32 %v142, %v226
    %v240 = vadd.f32 %v143, %v226
    %v241 = vadd.f32 %v144, %v226
    %v242 = vadd.f32 %v145, %v226
    %v243 = vadd.f32 %v146, %v226
    %v244 = vadd.f32 %v147, %v226
    %v245 = vadd.f32 %v148, %v226
    %v246 = vadd.f32 %v149, %v226
    %v247 = vadd.f32 %v150, %v226
    %v248 = vadd.f32 %v151, %v226
    %v249 = vadd.f32 %v152, %v226
    %v250 = vadd.f32 %v153, %v226
    %v251 = vadd.f32 %v154, %v226
    %v252 = vadd.f32 %v155, %v226
    %v253 = vadd.f32 %v156, %v226
    %v254 = vadd.f32 %v157, %v226
    %v255 = vadd.f32 %v158, %v226
    %v256 = vadd.f32 %v159, %v226
    %v257 = vadd.f32 %v160, %v226
    %v258 = vadd.f32 %v161, %v226
    %v259 = vadd.f32 %v162, %v226
    %v260 = vadd.f32 %v163, %v226
    %v261 = vadd.f32 %v164, %v226
    %v262 = vadd.f32 %v165, %v226
    %v263 = vadd.f32 %v166, %v226
    %v264 = vadd.f32 %v167, %v226
    %v265 = vadd.f32 %v168, %v226
    %v266 = vadd.f32 %v169, %v226
    %v267 = vadd.f32 %v170, %v226
    %v268 = vadd.f32 %v171, %v226
    %v269 = vadd.f32 %v172, %v226
    %v270 = vadd.f32 %v173, %v226
    %v271 = vadd.f32 %v174, %v226
    %v272 = vadd.f32 %v175, %v226
    %v273 = vadd.f32 %v176, %v226
    %v274 = vadd.f32 %v177, %v226
    %v275 = vadd.f32 %v178, %v226
    %v276 = vadd.f32 %v179, %v226
    %v277 = vadd.f32 %v180, %v226
    %v278 = vadd.f32 %v181, %v226
    %v279 = vadd.f32 %v182, %v226
    %v280 = vadd.f32 %v183, %v226
    %v281 = vadd.f32 %v184, %v226
    %v282 = vadd.f32 %v185, %v226
    %v283 = vadd.f32 %v186, %v226
    %v284 = vadd.f32 %v187, %v226
    %v285 = vadd.f32 %v188, %v226
    %v286 = vadd.f32 %v189, %v226
    %v287 = vadd.f32 %v190, %v226
    %v288 = vadd.f32 %v191, %v226
    %v289 = vadd.f32 %v192, %v226
    %v290 = vadd.f32 %v193, %v226
    %v291 = vadd.f32 %v194, %v226
    %v292 = vadd.f32 %v195, %v226
    %v293 = vadd.f32 %v196, %v226
    %v294 = vadd.f32 %v197, %v226
    %v295 = vadd.f32 %v198, %v226
    %v296 = vadd.f32 %v199, %v226
    %v297 = vadd.f32 %v200, %v226
    %v298 = vadd.f32 %v201, %v226
    %v299 = vadd.f32 %v202, %v226
    %v300 = vadd.f32 %v203, %v226
    %v301 = vadd.f32 %v204, %v226
    %v302 = vadd.f32 %v205, %v226
    %v303 = vadd.f32 %v206, %v226
    %v304 = vadd.f32 %v207, %v226
    %v305 = vadd.f32 %v208, %v226
    %v306 = vadd.f32 %v209, %v226
    %v307 = vadd.f32 %v210, %v226
    %v308 = vadd.f32 %v211, %v226
    %v309 = vadd.f32 %v212, %v226
    %v310 = vadd.f32 %v213, %v226
    %v311 = vadd.f32 %v214, %v226
    %v312 = vadd.f32 %v215, %v226
    %v313 = vadd.f32 %v216, %v226
    %v314 = vadd.f32 %v217, %v226
    %v315 = vadd.f32 %v218, %v226
    %v316 = vadd.f32 %v219, %v226
    %v317 = vadd.f32 %v220, %v226
    %v318 = vadd.f32 %v221, %v226
    %v319 = vadd.f32 %v222, %v226
    %v320 = vadd.f32 %v223, %v226
    %v321 = vadd.f32 %v224, %v226
    %v322 = vadd.f32 %v225, %v226
    %323 = vst [vmem:[#allocation7] sm:$0xff] %v227
    %324 = vst [vmem:[#allocation7 + $0x8] sm:$0xff] %v228
    %325 = vst [vmem:[#allocation7 + $0x10] sm:$0xff] %v229
    %326 = vst [vmem:[#allocation7 + $0x18] sm:$0xff] %v230
    %327 = vst [vmem:[#allocation7 + $0x20] sm:$0xff] %v231
    %328 = vst [vmem:[#allocation7 + $0x28] sm:$0xff] %v232
    %329 = vst [vmem:[#allocation7 + $0x30] sm:$0xff] %v233
    %330 = vst [vmem:[#allocation7 + $0x38] sm:$0xff] %v234
    %331 = vst [vmem:[#allocation7 + $0x40] sm:$0xff] %v235
    %332 = vst [vmem:[#allocation7 + $0x48] sm:$0xff] %v236
    %333 = vst [vmem:[#allocation7 + $0x50] sm:$0xff] %v237
    %334 = vst [vmem:[#allocation7 + $0x58] sm:$0xff] %v238
    %335 = vst [vmem:[#allocation7 + $0x60] sm:$0xff] %v239
    %336 = vst [vmem:[#allocation7 + $0x68] sm:$0xff] %v240
    %337 = vst [vmem:[#allocation7 + $0x70] sm:$0xff] %v241
    %338 = vst [vmem:[#allocation7 + $0x78] sm:$0xff] %v242
    %339 = vst [vmem:[#allocation7 + $0x80] sm:$0xff] %v243
    %340 = vst [vmem:[#allocation7 + $0x88] sm:$0xff] %v244
    %341 = vst [vmem:[#allocation7 + $0x90] sm:$0xff] %v245
    %342 = vst [vmem:[#allocation7 + $0x98] sm:$0xff] %v246
    %343 = vst [vmem:[#allocation7 + $0xa0] sm:$0xff] %v247
    %344 = vst [vmem:[#allocation7 + $0xa8] sm:$0xff] %v248
    %345 = vst [vmem:[#allocation7 + $0xb0] sm:$0xff] %v249
    %346 = vst [vmem:[#allocation7 + $0xb8] sm:$0xff] %v250
    %347 = vst [vmem:[#allocation7 + $0xc0] sm:$0xff] %v251
    %348 = vst [vmem:[#allocation7 + $0xc8] sm:$0xff] %v252
    %349 = vst [vmem:[#allocation7 + $0xd0] sm:$0xff] %v253
    %350 = vst [vmem:[#allocation7 + $0xd8] sm:$0xff] %v254
    %351 = vst [vmem:[#allocation7 + $0xe0] sm:$0xff] %v255
    %352 = vst [vmem:[#allocation7 + $0xe8] sm:$0xff] %v256
    %353 = vst [vmem:[#allocation7 + $0xf0] sm:$0xff] %v257
    %354 = vst [vmem:[#allocation7 + $0xf8] sm:$0xff] %v258
    %355 = vst [vmem:[#allocation7 + $0x100] sm:$0xff] %v259
    %356 = vst [vmem:[#allocation7 + $0x108] sm:$0xff] %v260
    %357 = vst [vmem:[#allocation7 + $0x110] sm:$0xff] %v261
    %358 = vst [vmem:[#allocation7 + $0x118] sm:$0xff] %v262
    %359 = vst [vmem:[#allocation7 + $0x120] sm:$0xff] %v263
    %360 = vst [vmem:[#allocation7 + $0x128] sm:$0xff] %v264
    %361 = vst [vmem:[#allocation7 + $0x130] sm:$0xff] %v265
    %362 = vst [vmem:[#allocation7 + $0x138] sm:$0xff] %v266
    %363 = vst [vmem:[#allocation7 + $0x140] sm:$0xff] %v267
    %364 = vst [vmem:[#allocation7 + $0x148] sm:$0xff] %v268
    %365 = vst [vmem:[#allocation7 + $0x150] sm:$0xff] %v269
    %366 = vst [vmem:[#allocation7 + $0x158] sm:$0xff] %v270
    %367 = vst [vmem:[#allocation7 + $0x160] sm:$0xff] %v271
    %368 = vst [vmem:[#allocation7 + $0x168] sm:$0xff] %v272
    %369 = vst [vmem:[#allocation7 + $0x170] sm:$0xff] %v273
    %370 = vst [vmem:[#allocation7 + $0x178] sm:$0xff] %v274
    %371 = vst [vmem:[#allocation7 + $0x180] sm:$0xff] %v275
    %372 = vst [vmem:[#allocation7 + $0x188] sm:$0xff] %v276
    %373 = vst [vmem:[#allocation7 + $0x190] sm:$0xff] %v277
    %374 = vst [vmem:[#allocation7 + $0x198] sm:$0xff] %v278
    %375 = vst [vmem:[#allocation7 + $0x1a0] sm:$0xff] %v279
    %376 = vst [vmem:[#allocation7 + $0x1a8] sm:$0xff] %v280
    %377 = vst [vmem:[#allocation7 + $0x1b0] sm:$0xff] %v281
    %378 = vst [vmem:[#allocation7 + $0x1b8] sm:$0xff] %v282
    %379 = vst [vmem:[#allocation7 + $0x1c0] sm:$0xff] %v283
    %380 = vst [vmem:[#allocation7 + $0x1c8] sm:$0xff] %v284
    %381 = vst [vmem:[#allocation7 + $0x1d0] sm:$0xff] %v285
    %382 = vst [vmem:[#allocation7 + $0x1d8] sm:$0xff] %v286
    %383 = vst [vmem:[#allocation7 + $0x1e0] sm:$0xff] %v287
    %384 = vst [vmem:[#allocation7 + $0x1e8] sm:$0xff] %v288
    %385 = vst [vmem:[#allocation7 + $0x1f0] sm:$0xff] %v289
    %386 = vst [vmem:[#allocation7 + $0x1f8] sm:$0xff] %v290
    %387 = vst [vmem:[#allocation7 + $0x200] sm:$0xff] %v291
    %388 = vst [vmem:[#allocation7 + $0x208] sm:$0xff] %v292
    %389 = vst [vmem:[#allocation7 + $0x210] sm:$0xff] %v293
    %390 = vst [vmem:[#allocation7 + $0x218] sm:$0xff] %v294
    %391 = vst [vmem:[#allocation7 + $0x220] sm:$0xff] %v295
    %392 = vst [vmem:[#allocation7 + $0x228] sm:$0xff] %v296
    %393 = vst [vmem:[#allocation7 + $0x230] sm:$0xff] %v297
    %394 = vst [vmem:[#allocation7 + $0x238] sm:$0xff] %v298
    %395 = vst [vmem:[#allocation7 + $0x240] sm:$0xff] %v299
    %396 = vst [vmem:[#allocation7 + $0x248] sm:$0xff] %v300
    %397 = vst [vmem:[#allocation7 + $0x250] sm:$0xff] %v301
    %398 = vst [vmem:[#allocation7 + $0x258] sm:$0xff] %v302
    %399 = vst [vmem:[#allocation7 + $0x260] sm:$0xff] %v303
    %400 = vst [vmem:[#allocation7 + $0x268] sm:$0xff] %v304
    %401 = vst [vmem:[#allocation7 + $0x270] sm:$0xff] %v305
    %402 = vst [vmem:[#allocation7 + $0x278] sm:$0xff] %v306
    %403 = vst [vmem:[#allocation7 + $0x280] sm:$0xff] %v307
    %404 = vst [vmem:[#allocation7 + $0x288] sm:$0xff] %v308
    %405 = vst [vmem:[#allocation7 + $0x290] sm:$0xff] %v309
    %406 = vst [vmem:[#allocation7 + $0x298] sm:$0xff] %v310
    %407 = vst [vmem:[#allocation7 + $0x2a0] sm:$0xff] %v311
    %408 = vst [vmem:[#allocation7 + $0x2a8] sm:$0xff] %v312
    %409 = vst [vmem:[#allocation7 + $0x2b0] sm:$0xff] %v313
    %410 = vst [vmem:[#allocation7 + $0x2b8] sm:$0xff] %v314
    %411 = vst [vmem:[#allocation7 + $0x2c0] sm:$0xff] %v315
    %412 = vst [vmem:[#allocation7 + $0x2c8] sm:$0xff] %v316
    %413 = vst [vmem:[#allocation7 + $0x2d0] sm:$0xff] %v317
    %414 = vst [vmem:[#allocation7 + $0x2d8] sm:$0xff] %v318
    %415 = vst [vmem:[#allocation7 + $0x2e0] sm:$0xff] %v319
    %416 = vst [vmem:[#allocation7 + $0x2e8] sm:$0xff] %v320
    %417 = vst [vmem:[#allocation7 + $0x2f0] sm:$0xff] %v321
    %418 = vst [vmem:[#allocation7 + $0x2f8] sm:$0xff] %v322
    // Predicated region
    $region18: #{tpu_custom_call.1} parent=1 // pred_check
      _
    $region19: #{tpu_custom_call.1} parent=1 // pred_check_branch
      %420 = sbr.rel (0) target = $region21
    $region20: #{tpu_custom_call.1} parent=1 // pred_region
      %s422 = ssub.s32 12288, 12288
      %423 = vsyncadd [#allocation6], %s422
      %s424 = sshll.u32 [#allocation7], 4
      %s425 = int_to_ptr.vmem [resolvable:$true] %s424
      %430 = dma.vmem_to_hbm [thread:$0]  %s425, 12288, %s3, [#allocation6], 3072, 3072, 192
    $region21: #{tpu_custom_call.1} parent=1 // pred_fallthru
      _
    // Predicated region
    $region22: #{tpu_custom_call.1} parent=1 // pred_check
      _
    $region23: #{tpu_custom_call.1} parent=1 // pred_check_branch
      %432 = sbr.rel (0) target = $region25
    $region24: #{tpu_custom_call.1} parent=1 // pred_region
      %433 = dma.done [#allocation6], 12288
    $region25: #{tpu_custom_call.1} parent=1 // pred_fallthru
      _
    %434 = vsyncpa [#allocation5], 1
    %435 = vsyncpa [#allocation6], 1

</llo_original>
